<compile_context>
chip_gen: v6e
topology: v6e:2x2x1
jax: 0.10.0
libtpu: 0.0.40
codegen_flags: <defaults>
</compile_context>

<pallas_src>
import jax
import jax.numpy as jnp
from jax.experimental import pallas as pl
from jax.experimental.pallas import tpu as pltpu

LANE = 128  # padded width of the hidden layers


def mlp_kernel(x_ref, w1_ref, w2_ref, w3_ref, w4t_ref, b_ref, o_ref):
    x = x_ref[...]                      # (TB, K)   compute dtype (bf16 or f32)
    b = b_ref[...]                      # (8, LANE) f32; rows 0..2 = b1,b2,b3; b[3,0] = b4

    z1 = jnp.dot(x, w1_ref[...], preferred_element_type=jnp.float32) + b[0:1, :]
    a1 = jnp.maximum(z1, 0.0)                                    # relu (f32 VPU)

    z2 = jnp.dot(a1.astype(w2_ref.dtype), w2_ref[...],
                 preferred_element_type=jnp.float32) + b[1:2, :]
    a2 = jnp.tanh(z2)                                            # tanh (f32 EUP)

    z3 = jnp.dot(a2.astype(w3_ref.dtype), w3_ref[...],
                 preferred_element_type=jnp.float32) + b[2:3, :]
    a3 = jnp.maximum(z3, 0.0)                                    # relu

    # Layer 4 "transposed" on the MXU: (8, LANE) . (TB, LANE)^T -> (8, TB).
    # Row 0 is the real output neuron; the batch runs along lanes, so the
    # final store is a lane-dense (1, TB) row instead of a padded (TB, 128) slab.
    z4t = jax.lax.dot_general(
        w4t_ref[...], a3.astype(w4t_ref.dtype),
        dimension_numbers=(((1,), (1,)), ((), ())),
        preferred_element_type=jnp.float32)                      # (8, TB)
    z4 = z4t[0:1, :] + b[3:4, 0:1]                               # (1, TB)
    o_ref[...] = jax.nn.sigmoid(z4)       # sigmoid only on the real output row


def _round_up(n, m):
    return (n + m - 1) // m * m


def _pad_to(a, shape):
    return jnp.pad(a, tuple((0, s - d) for d, s in zip(a.shape, shape)))


def custom_network_forward(x, params, *, compute_dtype=jnp.bfloat16,
                           batch_tile=2048):
    """x: (B, input_size) f32. params: w{i}: (in, out), b{i}: (1, out)."""
    B, K = x.shape

    # ---- operands -----------------------------------------------------------
    # Hidden widths zero-padded to 128 lanes; relu(0)=0 / tanh(0)=0 and the
    # padded weight rows are zero, so padding is exact.
    w1 = _pad_to(params["w1"], (K, LANE)).astype(compute_dtype)
    w2 = _pad_to(params["w2"], (LANE, LANE)).astype(compute_dtype)
    w3 = _pad_to(params["w3"], (LANE, LANE)).astype(compute_dtype)
    # Layer-4 weights pre-transposed: w4t[0, k] = w4[k, 0]  (shape (8, LANE)).
    w4t = _pad_to(params["w4"].T, (8, LANE)).astype(compute_dtype)
    biases = jnp.zeros((8, LANE), jnp.float32)
    for i in range(4):
        bi = params[f"b{i + 1}"].reshape(-1).astype(jnp.float32)
        biases = biases.at[i, : bi.shape[0]].set(bi)

    # ---- batch tiling -------------------------------------------------------
    # Tile is always a multiple of 128 -> legal (8,128)/(16,128) blocks for both
    # f32 and bf16 activation tiles, whatever batch_tile the caller passes.
    batch_tile = _round_up(max(int(batch_tile), 128), 128)
    tb = min(batch_tile, _round_up(B, 128))
    b_pad = _round_up(B, tb)
    # v7x: make sure the "parallel" batch axis has >= 2 grid steps so both
    # TensorCores get work whenever the padded batch allows it.
    if b_pad == tb and b_pad % 256 == 0:
        tb //= 2
    n_steps = b_pad // tb

    x_p = _pad_to(x, (b_pad, K)).astype(compute_dtype)

    # ---- compiler params ----------------------------------------------------
    itemsize = jnp.dtype(compute_dtype).itemsize
    est_vmem = (
        8 * tb * LANE * 4                  # live f32 intermediates (z/a per layer)
        + 2 * tb * K * itemsize            # double-buffered x tile
        + 2 * tb * 4                       # double-buffered (1, tb) output tile
        + (K + 2 * LANE + 8) * LANE * itemsize + 8 * LANE * 4  # resident weights/biases
    )
    compiler_kwargs = dict(dimension_semantics=("parallel",))   # megacore split
    if est_vmem > 30 * (1 << 20):
        # Only for very large user tiles (>= ~8K rows): raise the scoped-VMEM
        # limit past the 32 MiB default, capped under v7x's 64 MiB physical VMEM.
        compiler_kwargs["vmem_limit_bytes"] = min(int(est_vmem * 3 // 2), 60 << 20)

    out = pl.pallas_call(
        mlp_kernel,
        out_shape=jax.ShapeDtypeStruct((1, b_pad), jnp.float32),
        grid=(n_steps,),
        in_specs=[
            pl.BlockSpec((tb, K), lambda i: (i, 0)),        # x: streams over batch
            pl.BlockSpec((K, LANE), lambda i: (0, 0)),      # weights: VMEM-resident
            pl.BlockSpec((LANE, LANE), lambda i: (0, 0)),
            pl.BlockSpec((LANE, LANE), lambda i: (0, 0)),
            pl.BlockSpec((8, LANE), lambda i: (0, 0)),      # transposed layer-4 weights
            pl.BlockSpec((8, LANE), lambda i: (0, 0)),      # packed biases
        ],
        out_specs=pl.BlockSpec((1, tb), lambda i: (0, i)),  # lane-dense scalar outputs
        compiler_params=pltpu.CompilerParams(**compiler_kwargs),
    )(x_p, w1, w2, w3, w4t, biases)

    # Sample j's output sits at out[0, j]; just drop batch padding and reshape.
    return out.reshape(b_pad, 1)[:B]


def init_params(key, input_size):
    """Deterministic synthetic init mirroring nn.Linear's U(-1/sqrt(fan_in), +)."""
    sizes = [(input_size, 64), (64, 32), (32, 10), (10, 1)]
    params = {}
    for i, (fan_in, fan_out) in enumerate(sizes, start=1):
        key, kw, kb = jax.random.split(key, 3)
        bound = 1.0 / jnp.sqrt(jnp.float32(fan_in))
        params[f"w{i}"] = jax.random.uniform(
            kw, (fan_in, fan_out), jnp.float32, -bound, bound)
        params[f"b{i}"] = jax.random.uniform(
            kb, (1, fan_out), jnp.float32, -bound, bound)
    return params


def reference_forward(x, p):
    a1 = jnp.maximum(x @ p["w1"] + p["b1"], 0.0)
    a2 = jnp.tanh(a1 @ p["w2"] + p["b2"])
    a3 = jnp.maximum(a2 @ p["w3"] + p["b3"], 0.0)
    return jax.nn.sigmoid(a3 @ p["w4"] + p["b4"])


if __name__ == "__main__":
    key = jax.random.PRNGKey(0)
    k_x, k_p = jax.random.split(key)

    batch, input_size = 8, 32
    x = jax.random.normal(k_x, (batch, input_size), jnp.float32)
    params = init_params(k_p, input_size)

    ref = reference_forward(x, params)

    # f32 compute path: should match the JAX reference tightly.
    out_f32 = jax.block_until_ready(
        custom_network_forward(x, params, compute_dtype=jnp.float32))
    assert out_f32.shape == (batch, 1)
    assert jnp.allclose(out_f32, ref, atol=1e-4, rtol=1e-4), "f32 mismatch"

    # bf16 MXU-operand path (v6e/v7x recommendation): looser tolerance
    # (error compounds through 4 layers; fine for this input distribution).
    out_bf16 = jax.block_until_ready(
        custom_network_forward(x, params, compute_dtype=jnp.bfloat16))
    assert out_bf16.shape == (batch, 1)
    assert jnp.allclose(out_bf16, ref, atol=3e-2, rtol=3e-2), "bf16 mismatch"

    # Exercise the multi-step grid + tile-halving path (>=2 grid steps).
    big_batch = 2048
    xb = jax.random.normal(k_x, (big_batch, input_size), jnp.float32)
    refb = reference_forward(xb, params)
    outb = jax.block_until_ready(custom_network_forward(xb, params))
    assert outb.shape == (big_batch, 1)
    assert jnp.allclose(outb, refb, atol=3e-2, rtol=3e-2), "bf16 big-batch mismatch"

    print("KERNEL_OK")
</pallas_src>

<mosaic_0001>
module attributes {stable_mosaic.version = 11 : i64} {
  func.func @mlp_kernel(%arg0: i32, %arg1: memref<128x32xf32, #tpu.memory_space<vmem>>, %arg2: memref<32x128xf32, #tpu.memory_space<vmem>>, %arg3: memref<128x128xf32, #tpu.memory_space<vmem>>, %arg4: memref<128x128xf32, #tpu.memory_space<vmem>>, %arg5: memref<8x128xf32, #tpu.memory_space<vmem>>, %arg6: memref<8x128xf32, #tpu.memory_space<vmem>>, %arg7: memref<1x128xf32, #tpu.memory_space<vmem>>) attributes {dimension_semantics = [#tpu.dimension_semantics<parallel>], iteration_bounds = array<i64: 1>, scalar_prefetch = 0 : i64, scratch_operands = 0 : i64, tpu.core_type = #tpu.core_type<tc>, window_params = [{transform_indices = @transform_0, window_bounds = array<i64: 128, 32>}, {pipeline_mode = #tpu.pipeline_mode<synchronous>, transform_indices = @transform_1, window_bounds = array<i64: 32, 128>}, {pipeline_mode = #tpu.pipeline_mode<synchronous>, transform_indices = @transform_2, window_bounds = array<i64: 128, 128>}, {pipeline_mode = #tpu.pipeline_mode<synchronous>, transform_indices = @transform_3, window_bounds = array<i64: 128, 128>}, {pipeline_mode = #tpu.pipeline_mode<synchronous>, transform_indices = @transform_4, window_bounds = array<i64: 8, 128>}, {pipeline_mode = #tpu.pipeline_mode<synchronous>, transform_indices = @transform_5, window_bounds = array<i64: 8, 128>}, {transform_indices = @transform_6, window_bounds = array<i64: 1, 128>}]} {
    %c0 = arith.constant 0 : index
    %c0_0 = arith.constant 0 : index
    %0 = vector.load %arg1[%c0, %c0_0] : memref<128x32xf32, #tpu.memory_space<vmem>>, vector<128x32xf32>
    %c0_1 = arith.constant 0 : index
    %c0_2 = arith.constant 0 : index
    %1 = vector.load %arg6[%c0_1, %c0_2] : memref<8x128xf32, #tpu.memory_space<vmem>>, vector<8x128xf32>
    %c0_3 = arith.constant 0 : index
    %c0_4 = arith.constant 0 : index
    %2 = vector.load %arg2[%c0_3, %c0_4] : memref<32x128xf32, #tpu.memory_space<vmem>>, vector<32x128xf32>
    %cst = arith.constant dense<0.000000e+00> : vector<128x128xf32>
    %3 = tpu.matmul %0, %2, %cst {dimension_numbers = #tpu.dot_dimension_numbers<[1], [0], [0], [1], [0, 0, 1, 1], [], []>} : vector<128x32xf32>, vector<32x128xf32>, vector<128x128xf32> -> vector<128x128xf32>
    %4 = vector.extract_strided_slice %1 {offsets = [0, 0], sizes = [1, 128], strides = [1, 1]} : vector<8x128xf32> to vector<1x128xf32>
    %5 = vector.broadcast %4 : vector<1x128xf32> to vector<128x128xf32>
    %6 = arith.addf %3, %5 : vector<128x128xf32>
    %cst_5 = arith.constant 0.000000e+00 : f32
    %7 = vector.broadcast %cst_5 : f32 to vector<128x128xf32>
    %8 = arith.maximumf %6, %7 : vector<128x128xf32>
    %c0_6 = arith.constant 0 : index
    %c0_7 = arith.constant 0 : index
    %9 = vector.load %arg3[%c0_6, %c0_7] : memref<128x128xf32, #tpu.memory_space<vmem>>, vector<128x128xf32>
    %cst_8 = arith.constant dense<0.000000e+00> : vector<128x128xf32>
    %10 = tpu.matmul %8, %9, %cst_8 {dimension_numbers = #tpu.dot_dimension_numbers<[1], [0], [0], [1], [0, 0, 1, 1], [], []>} : vector<128x128xf32>, vector<128x128xf32>, vector<128x128xf32> -> vector<128x128xf32>
    %11 = vector.extract_strided_slice %1 {offsets = [1, 0], sizes = [1, 128], strides = [1, 1]} : vector<8x128xf32> to vector<1x128xf32>
    %12 = vector.broadcast %11 : vector<1x128xf32> to vector<128x128xf32>
    %13 = arith.addf %10, %12 : vector<128x128xf32>
    %14 = math.tanh %13 : vector<128x128xf32>
    %c0_9 = arith.constant 0 : index
    %c0_10 = arith.constant 0 : index
    %15 = vector.load %arg4[%c0_9, %c0_10] : memref<128x128xf32, #tpu.memory_space<vmem>>, vector<128x128xf32>
    %cst_11 = arith.constant dense<0.000000e+00> : vector<128x128xf32>
    %16 = tpu.matmul %14, %15, %cst_11 {dimension_numbers = #tpu.dot_dimension_numbers<[1], [0], [0], [1], [0, 0, 1, 1], [], []>} : vector<128x128xf32>, vector<128x128xf32>, vector<128x128xf32> -> vector<128x128xf32>
    %17 = vector.extract_strided_slice %1 {offsets = [2, 0], sizes = [1, 128], strides = [1, 1]} : vector<8x128xf32> to vector<1x128xf32>
    %18 = vector.broadcast %17 : vector<1x128xf32> to vector<128x128xf32>
    %19 = arith.addf %16, %18 : vector<128x128xf32>
    %cst_12 = arith.constant 0.000000e+00 : f32
    %20 = vector.broadcast %cst_12 : f32 to vector<128x128xf32>
    %21 = arith.maximumf %19, %20 : vector<128x128xf32>
    %c0_13 = arith.constant 0 : index
    %c0_14 = arith.constant 0 : index
    %22 = vector.load %arg5[%c0_13, %c0_14] : memref<8x128xf32, #tpu.memory_space<vmem>>, vector<8x128xf32>
    %cst_15 = arith.constant dense<0.000000e+00> : vector<8x128xf32>
    %23 = tpu.matmul %22, %21, %cst_15 {dimension_numbers = #tpu.dot_dimension_numbers<[1], [1], [0], [0], [0, 0, 1, 0], [], []>} : vector<8x128xf32>, vector<128x128xf32>, vector<8x128xf32> -> vector<8x128xf32>
    %24 = vector.extract_strided_slice %23 {offsets = [0, 0], sizes = [1, 128], strides = [1, 1]} : vector<8x128xf32> to vector<1x128xf32>
    %25 = vector.extract_strided_slice %1 {offsets = [3, 0], sizes = [1, 1], strides = [1, 1]} : vector<8x128xf32> to vector<1x1xf32>
    %26 = vector.broadcast %25 : vector<1x1xf32> to vector<1x128xf32>
    %27 = arith.addf %24, %26 : vector<1x128xf32>
    %28 = arith.negf %27 : vector<1x128xf32>
    %29 = math.exp %28 : vector<1x128xf32>
    %cst_16 = arith.constant 1.000000e+00 : f32
    %30 = vector.broadcast %cst_16 : f32 to vector<1x128xf32>
    %31 = arith.addf %30, %29 : vector<1x128xf32>
    %32 = arith.divf %30, %31 : vector<1x128xf32>
    %c0_17 = arith.constant 0 : index
    %c0_18 = arith.constant 0 : index
    %33 = vector.load %arg7[%c0_17, %c0_18] : memref<1x128xf32, #tpu.memory_space<vmem>>, vector<1x128xf32>
    tpu.vector_store %arg7[%c0_17, %c0_18], %32 {strides = array<i32>} : memref<1x128xf32, #tpu.memory_space<vmem>>, vector<1x128xf32>,
    return
  }
  func.func @transform_0(%arg0: i32) -> (i32, i32) {
    %c0_i32 = arith.constant 0 : i32
    %c0_i32_0 = arith.constant 0 : i32
    return %arg0, %c0_i32 : i32, i32
  }
  func.func @transform_1(%arg0: i32) -> (i32, i32) {
    %c0_i32 = arith.constant 0 : i32
    %c0_i32_0 = arith.constant 0 : i32
    %c0_i32_1 = arith.constant 0 : i32
    return %c0_i32, %c0_i32_0 : i32, i32
  }
  func.func @transform_2(%arg0: i32) -> (i32, i32) {
    %c0_i32 = arith.constant 0 : i32
    %c0_i32_0 = arith.constant 0 : i32
    %c0_i32_1 = arith.constant 0 : i32
    return %c0_i32, %c0_i32_0 : i32, i32
  }
  func.func @transform_3(%arg0: i32) -> (i32, i32) {
    %c0_i32 = arith.constant 0 : i32
    %c0_i32_0 = arith.constant 0 : i32
    %c0_i32_1 = arith.constant 0 : i32
    return %c0_i32, %c0_i32_0 : i32, i32
  }
  func.func @transform_4(%arg0: i32) -> (i32, i32) {
    %c0_i32 = arith.constant 0 : i32
    %c0_i32_0 = arith.constant 0 : i32
    %c0_i32_1 = arith.constant 0 : i32
    return %c0_i32, %c0_i32_0 : i32, i32
  }
  func.func @transform_5(%arg0: i32) -> (i32, i32) {
    %c0_i32 = arith.constant 0 : i32
    %c0_i32_0 = arith.constant 0 : i32
    %c0_i32_1 = arith.constant 0 : i32
    return %c0_i32, %c0_i32_0 : i32, i32
  }
  func.func @transform_6(%arg0: i32) -> (i32, i32) {
    %c0_i32 = arith.constant 0 : i32
    %c0_i32_0 = arith.constant 0 : i32
    return %c0_i32, %arg0 : i32, i32
  }
}

</mosaic_0001>

<llo_original>
// kernel: tpu_custom_call.1
$region0: #{tpu_custom_call.1}
  #allocation0 [shape = 'u32[]', space=smem, size = 0x4, offset = 0x4, fixed_abs, tag = 'smem constant byte address 0x4 - core index']
  #allocation1 [shape = 'u32[144,128]{1,0:T(1,128)}', space=vmem, size = 0x12000, scoped, tag = 'internal scratch']
  %s0 = inlined_call_operand.vmem [shape: f32[128,32], index: 0, kind: input, shape index: {}]
  %s1 = inlined_call_operand.vmem [shape: f32[32,128], index: 1, kind: input, shape index: {}]
  %s2 = inlined_call_operand.vmem [shape: f32[128,128], index: 2, kind: input, shape index: {}]
  %s3 = inlined_call_operand.hbm [shape: f32[128,128], index: 3, kind: input, shape index: {}]
  %s4 = inlined_call_operand.hbm [shape: f32[8,128], index: 4, kind: input, shape index: {}]
  %s5 = inlined_call_operand.vmem [shape: f32[8,128], index: 5, kind: input, shape index: {}]
  %s6 = inlined_call_operand.hbm [shape: f32[1,128], index: 6, kind: output, shape index: {}]
  %s7 = sld [smem:[#allocation0]]
  $region42: #{tpu_custom_call.1} parent=0
    _
  %s9 = ssub.s32 1, %s7
  %s10 = scalar_select 0, %s9, %s7
  $region1: #{tpu_custom_call.1} parent=0
    #allocation2 [shape = 'u8[65536]{0}', space=vmem, size = 0x10000, scoped, tag = 'input window, operand 3, single buffered']
    #allocation3 [shape = 's32[1]{0}', space=sflag, size = 0x4, scoped, tag = 'scoped memory for tpu_custom_call.1']
    #allocation4 [shape = 's32[1]{0}', space=sflag, size = 0x4, scoped, tag = 'scoped memory for tpu_custom_call.1']
    #allocation5 [shape = 'u8[4096]{0}', space=vmem, size = 0x1000, scoped, tag = 'input window, operand 4, single buffered']
    #allocation6 [shape = 's32[1]{0}', space=sflag, size = 0x4, scoped, tag = 'scoped memory for tpu_custom_call.1']
    #allocation7 [shape = 'u8[512]{0}', space=vmem, size = 0x400, scoped, tag = 'output window, operand 0, single buffered']
    %11 = vsyncpa [#allocation3], 0
    %12 = vsyncpa [#allocation6], 0
    %13 = vsyncpa [#allocation4], 0
    // Predicated region
    $region2: #{tpu_custom_call.1} parent=1 // pred_check
      _
    $region3: #{tpu_custom_call.1} parent=1 // pred_check_branch
      %15 = sbr.rel (0) target = $region5
    $region4: #{tpu_custom_call.1} parent=1 // pred_region
      _
    $region5: #{tpu_custom_call.1} parent=1 // pred_fallthru
      _
    // Predicated region
    $region6: #{tpu_custom_call.1} parent=1 // pred_check
      _
    $region7: #{tpu_custom_call.1} parent=1 // pred_check_branch
      %17 = sbr.rel (0) target = $region9
    $region8: #{tpu_custom_call.1} parent=1 // pred_region
      _
    $region9: #{tpu_custom_call.1} parent=1 // pred_fallthru
      _
    // Predicated region
    $region10: #{tpu_custom_call.1} parent=1 // pred_check
      _
    $region11: #{tpu_custom_call.1} parent=1 // pred_check_branch
      %19 = sbr.rel (0) target = $region13
    $region12: #{tpu_custom_call.1} parent=1 // pred_region
      _
    $region13: #{tpu_custom_call.1} parent=1 // pred_fallthru
      _
    // Predicated region
    $region14: #{tpu_custom_call.1} parent=1 // pred_check
      _
    $region15: #{tpu_custom_call.1} parent=1 // pred_check_branch
      %21 = sbr.rel (0) target = $region17
    $region16: #{tpu_custom_call.1} parent=1 // pred_region
      %s23 = ssub.s32 2048, 2048
      %24 = vsyncadd [#allocation3], %s23
      %s25 = sshll.u32 [#allocation2], 4
      %s26 = int_to_ptr.vmem [resolvable:$true] %s25
      %31 = dma.hbm_to_vmem [thread:$0]  %s3, 2048, %s26, [#allocation3], 128, 128, 8
    $region17: #{tpu_custom_call.1} parent=1 // pred_fallthru
      _
    // Predicated region
    $region18: #{tpu_custom_call.1} parent=1 // pred_check
      _
    $region19: #{tpu_custom_call.1} parent=1 // pred_check_branch
      %33 = sbr.rel (0) target = $region21
    $region20: #{tpu_custom_call.1} parent=1 // pred_region
      %s35 = ssub.s32 128, 128
      %36 = vsyncadd [#allocation6], %s35
      %s38 = sshll.u32 [#allocation5], 4
      %s39 = int_to_ptr.vmem [resolvable:$true] %s38
      %41 = dma.hbm_to_vmem [thread:$0]  %s4, 128, %s39, [#allocation6]
    $region21: #{tpu_custom_call.1} parent=1 // pred_fallthru
      _
    // Predicated region
    $region22: #{tpu_custom_call.1} parent=1 // pred_check
      _
    $region23: #{tpu_custom_call.1} parent=1 // pred_check_branch
      %43 = sbr.rel (0) target = $region25
    $region24: #{tpu_custom_call.1} parent=1 // pred_region
      _
    $region25: #{tpu_custom_call.1} parent=1 // pred_fallthru
      _
    // Predicated region
    $region26: #{tpu_custom_call.1} parent=1 // pred_check
      _
    $region27: #{tpu_custom_call.1} parent=1 // pred_check_branch
      %45 = sbr.rel (0) target = $region29
    $region28: #{tpu_custom_call.1} parent=1 // pred_region
      %46 = dma.done [#allocation3], 2048
    $region29: #{tpu_custom_call.1} parent=1 // pred_fallthru
      _
    // Predicated region
    $region30: #{tpu_custom_call.1} parent=1 // pred_check
      _
    $region31: #{tpu_custom_call.1} parent=1 // pred_check_branch
      %48 = sbr.rel (0) target = $region33
    $region32: #{tpu_custom_call.1} parent=1 // pred_region
      %49 = dma.done [#allocation6], 128
    $region33: #{tpu_custom_call.1} parent=1 // pred_fallthru
      _
    %v50 = vld [vmem:[%s0] sm:$0xff]
    %v51 = vld [vmem:[%s0 + $0x8] sm:$0xff]
    %v52 = vld [vmem:[%s0 + $0x10] sm:$0xff]
    %v53 = vld [vmem:[%s0 + $0x18] sm:$0xff]
    %v54 = vld [vmem:[%s0 + $0x20] sm:$0xff]
    %v55 = vld [vmem:[%s0 + $0x28] sm:$0xff]
    %v56 = vld [vmem:[%s0 + $0x30] sm:$0xff]
    %v57 = vld [vmem:[%s0 + $0x38] sm:$0xff]
    %v58 = vld [vmem:[%s0 + $0x40] sm:$0xff]
    %v59 = vld [vmem:[%s0 + $0x48] sm:$0xff]
    %v60 = vld [vmem:[%s0 + $0x50] sm:$0xff]
    %v61 = vld [vmem:[%s0 + $0x58] sm:$0xff]
    %v62 = vld [vmem:[%s0 + $0x60] sm:$0xff]
    %v63 = vld [vmem:[%s0 + $0x68] sm:$0xff]
    %v64 = vld [vmem:[%s0 + $0x70] sm:$0xff]
    %v65 = vld [vmem:[%s0 + $0x78] sm:$0xff]
    %v66 = vld [vmem:[%s5] sm:$0xff]
    %v67 = vld [vmem:[%s1] sm:$0xff]
    %v68 = vld [vmem:[%s1 + $0x8] sm:$0xff]
    %v69 = vld [vmem:[%s1 + $0x10] sm:$0xff]
    %v70 = vld [vmem:[%s1 + $0x18] sm:$0xff]
    %v71 = vlaneseq
    %v72 = vshrl.u32 %v71, 7
    %v73 = vsub.s32 0, %v72
    %v74 = vrot.slane %v66, %v73
    %vm75 = vcmask 261120
    %v77 = vsel %vm75, %v50, 0
    %v80 = vsel %vm75, %v51, 0
    %v83 = vsel %vm75, %v52, 0
    %v86 = vsel %vm75, %v53, 0
    %v89 = vsel %vm75, %v54, 0
    %v92 = vsel %vm75, %v55, 0
    %v95 = vsel %vm75, %v56, 0
    %v98 = vsel %vm75, %v57, 0
    %v101 = vsel %vm75, %v58, 0
    %v104 = vsel %vm75, %v59, 0
    %v107 = vsel %vm75, %v60, 0
    %v110 = vsel %vm75, %v61, 0
    %v113 = vsel %vm75, %v62, 0
    %v116 = vsel %vm75, %v63, 0
    %v119 = vsel %vm75, %v64, 0
    %v122 = vsel %vm75, %v65, 0
    %124 = vmatprep.subr.mxu0 0.0
    %125 = vmatpush1.msra.mxu0 0.0
    %126 = vmatprep.subr.mxu0 0.0
    %127 = vmatpush1.msra.mxu0 0.0
    %128 = vmatprep.subr.mxu0 0.0
    %129 = vmatpush1.msra.mxu0 0.0
    %130 = vmatprep.subr.mxu0 0.0
    %131 = vmatpush1.msra.mxu0 0.0
    %132 = vmatprep.subr.mxu0 0.0
    %133 = vmatpush1.msra.mxu0 0.0
    %134 = vmatprep.subr.mxu0 0.0
    %135 = vmatpush1.msra.mxu0 0.0
    %136 = vmatprep.subr.mxu0 0.0
    %137 = vmatpush1.msra.mxu0 0.0
    %138 = vmatprep.subr.mxu0 0.0
    %139 = vmatpush1.msra.mxu0 0.0
    %140 = vmatprep.subr.mxu0 0.0
    %141 = vmatpush1.msra.mxu0 0.0
    %142 = vmatprep.subr.mxu0 0.0
    %143 = vmatpush1.msra.mxu0 0.0
    %144 = vmatprep.subr.mxu0 0.0
    %145 = vmatpush1.msra.mxu0 0.0
    %146 = vmatprep.subr.mxu0 0.0
    %147 = vmatpush1.msra.mxu0 0.0
    %148 = vmatprep.subr.mxu0 0.0
    %149 = vmatpush1.msra.mxu0 %v70
    %150 = vmatprep.subr.mxu0 0.0
    %151 = vmatpush1.msra.mxu0 %v69
    %152 = vmatprep.subr.mxu0 0.0
    %153 = vmatpush1.msra.mxu0 %v68
    %154 = vmatprep.subr.mxu0 0.0
    %155 = vmatpush1.msra.mxu0 %v67
    %156 = vmatprep.subr.mxu0 0.0
    %157 = vmatpush2.msra.mxu0 0.0
    %158 = vmatprep.subr.mxu0 0.0
    %159 = vmatpush2.msra.mxu0 0.0
    %160 = vmatprep.subr.mxu0 0.0
    %161 = vmatpush2.msra.mxu0 0.0
    %162 = vmatprep.subr.mxu0 0.0
    %163 = vmatpush2.msra.mxu0 0.0
    %164 = vmatprep.subr.mxu0 0.0
    %165 = vmatpush2.msra.mxu0 0.0
    %166 = vmatprep.subr.mxu0 0.0
    %167 = vmatpush2.msra.mxu0 0.0
    %168 = vmatprep.subr.mxu0 0.0
    %169 = vmatpush2.msra.mxu0 0.0
    %170 = vmatprep.subr.mxu0 0.0
    %171 = vmatpush2.msra.mxu0 0.0
    %172 = vmatprep.subr.mxu0 0.0
    %173 = vmatpush2.msra.mxu0 0.0
    %174 = vmatprep.subr.mxu0 0.0
    %175 = vmatpush2.msra.mxu0 0.0
    %176 = vmatprep.subr.mxu0 0.0
    %177 = vmatpush2.msra.mxu0 0.0
    %178 = vmatprep.subr.mxu0 0.0
    %179 = vmatpush2.msra.mxu0 0.0
    %180 = vmatprep.subr.mxu0 0.0
    %181 = vmatpush2.msra.mxu0 0.0
    %182 = vmatprep.subr.mxu0 0.0
    %183 = vmatpush2.msra.mxu0 0.0
    %184 = vmatprep.subr.mxu0 0.0
    %185 = vmatpush2.msra.mxu0 0.0
    %186 = vmatprep.subr.mxu0 0.0
    %187 = vmatpush2.msra.mxu0 0.0
    %188 = vmatprep.mubr.f32.mxu0 0.0
    %189 = vmatmul.mubr.f32.gmra.mxu0 %v77
    %v190 = vpop.f32.mrf.mxu0
    %v191 = vadd.f32 %v74, %v190
    %v192 = vpop.f32.mrf.mxu0
    %193 = vmatprep.mubr.f32.mxu0 0.0
    %194 = vmatmul.mubr.f32.gmra.mxu0 %v80
    %v195 = vpop.f32.mrf.mxu0
    %v196 = vadd.f32 %v74, %v195
    %v197 = vpop.f32.mrf.mxu0
    %198 = vmatprep.mubr.f32.mxu0 0.0
    %199 = vmatmul.mubr.f32.gmra.mxu0 %v83
    %v200 = vpop.f32.mrf.mxu0
    %v201 = vadd.f32 %v74, %v200
    %v202 = vpop.f32.mrf.mxu0
    %203 = vmatprep.mubr.f32.mxu0 0.0
    %204 = vmatmul.mubr.f32.gmra.mxu0 %v86
    %v205 = vpop.f32.mrf.mxu0
    %v206 = vadd.f32 %v74, %v205
    %v207 = vpop.f32.mrf.mxu0
    %208 = vmatprep.mubr.f32.mxu0 0.0
    %209 = vmatmul.mubr.f32.gmra.mxu0 %v89
    %v210 = vpop.f32.mrf.mxu0
    %v211 = vadd.f32 %v74, %v210
    %v212 = vpop.f32.mrf.mxu0
    %213 = vmatprep.mubr.f32.mxu0 0.0
    %214 = vmatmul.mubr.f32.gmra.mxu0 %v92
    %v215 = vpop.f32.mrf.mxu0
    %v216 = vadd.f32 %v74, %v215
    %v217 = vpop.f32.mrf.mxu0
    %218 = vmatprep.mubr.f32.mxu0 0.0
    %219 = vmatmul.mubr.f32.gmra.mxu0 %v95
    %v220 = vpop.f32.mrf.mxu0
    %v221 = vadd.f32 %v74, %v220
    %v222 = vpop.f32.mrf.mxu0
    %223 = vmatprep.mubr.f32.mxu0 0.0
    %224 = vmatmul.mubr.f32.gmra.mxu0 %v98
    %v225 = vpop.f32.mrf.mxu0
    %v226 = vadd.f32 %v74, %v225
    %v227 = vpop.f32.mrf.mxu0
    %228 = vmatprep.mubr.f32.mxu0 0.0
    %229 = vmatmul.mubr.f32.gmra.mxu0 %v101
    %v230 = vpop.f32.mrf.mxu0
    %v231 = vadd.f32 %v74, %v230
    %v232 = vpop.f32.mrf.mxu0
    %233 = vmatprep.mubr.f32.mxu0 0.0
    %234 = vmatmul.mubr.f32.gmra.mxu0 %v104
    %v235 = vpop.f32.mrf.mxu0
    %v236 = vadd.f32 %v74, %v235
    %v237 = vpop.f32.mrf.mxu0
    %238 = vmatprep.mubr.f32.mxu0 0.0
    %239 = vmatmul.mubr.f32.gmra.mxu0 %v107
    %v240 = vpop.f32.mrf.mxu0
    %v241 = vadd.f32 %v74, %v240
    %v242 = vpop.f32.mrf.mxu0
    %243 = vmatprep.mubr.f32.mxu0 0.0
    %244 = vmatmul.mubr.f32.gmra.mxu0 %v110
    %v245 = vpop.f32.mrf.mxu0
    %v246 = vadd.f32 %v74, %v245
    %v247 = vpop.f32.mrf.mxu0
    %248 = vmatprep.mubr.f32.mxu0 0.0
    %249 = vmatmul.mubr.f32.gmra.mxu0 %v113
    %v250 = vpop.f32.mrf.mxu0
    %v251 = vadd.f32 %v74, %v250
    %v252 = vpop.f32.mrf.mxu0
    %253 = vmatprep.mubr.f32.mxu0 0.0
    %254 = vmatmul.mubr.f32.gmra.mxu0 %v116
    %v255 = vpop.f32.mrf.mxu0
    %v256 = vadd.f32 %v74, %v255
    %v257 = vpop.f32.mrf.mxu0
    %258 = vmatprep.mubr.f32.mxu0 0.0
    %259 = vmatmul.mubr.f32.gmra.mxu0 %v119
    %v260 = vpop.f32.mrf.mxu0
    %v261 = vadd.f32 %v74, %v260
    %v262 = vpop.f32.mrf.mxu0
    %263 = vmatprep.mubr.f32.mxu0 0.0
    %264 = vmatmul.mubr.f32.gmra.mxu0 %v122
    %v265 = vpop.f32.mrf.mxu0
    %v266 = vadd.f32 %v74, %v265
    %v267 = vpop.f32.mrf.mxu0
    %268 = vdwg.mxu0
    %v269 = vmax.f32 %v191, 0.0
    %v270 = vmax.f32 %v196, 0.0
    %v271 = vmax.f32 %v201, 0.0
    %v272 = vmax.f32 %v206, 0.0
    %v273 = vmax.f32 %v211, 0.0
    %v274 = vmax.f32 %v216, 0.0
    %v275 = vmax.f32 %v221, 0.0
    %v276 = vmax.f32 %v226, 0.0
    %v277 = vmax.f32 %v231, 0.0
    %v278 = vmax.f32 %v236, 0.0
    %v279 = vmax.f32 %v241, 0.0
    %v280 = vmax.f32 %v246, 0.0
    %v281 = vmax.f32 %v251, 0.0
    %v282 = vmax.f32 %v256, 0.0
    %v283 = vmax.f32 %v261, 0.0
    %v284 = vmax.f32 %v266, 0.0
    %v285 = vld [vmem:[%s2] sm:$0xff]
    %v286 = vld [vmem:[%s2 + $0x8] sm:$0xff]
    %v287 = vld [vmem:[%s2 + $0x10] sm:$0xff]
    %v288 = vld [vmem:[%s2 + $0x18] sm:$0xff]
    %v289 = vld [vmem:[%s2 + $0x20] sm:$0xff]
    %v290 = vld [vmem:[%s2 + $0x28] sm:$0xff]
    %v291 = vld [vmem:[%s2 + $0x30] sm:$0xff]
    %v292 = vld [vmem:[%s2 + $0x38] sm:$0xff]
    %v293 = vld [vmem:[%s2 + $0x40] sm:$0xff]
    %v294 = vld [vmem:[%s2 + $0x48] sm:$0xff]
    %v295 = vld [vmem:[%s2 + $0x50] sm:$0xff]
    %v296 = vld [vmem:[%s2 + $0x58] sm:$0xff]
    %v297 = vld [vmem:[%s2 + $0x60] sm:$0xff]
    %v298 = vld [vmem:[%s2 + $0x68] sm:$0xff]
    %v299 = vld [vmem:[%s2 + $0x70] sm:$0xff]
    %v300 = vld [vmem:[%s2 + $0x78] sm:$0xff]
    %v301 = vlaneseq
    %v302 = vshrl.u32 %v301, 7
    %v303 = vsub.s32 1, %v302
    %v304 = vrot.slane %v66, %v303
    %305 = vmatprep.subr.mxu0 0.0
    %306 = vmatpush1.msra.mxu0 %v300
    %307 = vmatprep.subr.mxu0 0.0
    %308 = vmatpush1.msra.mxu0 %v299
    %309 = vmatprep.subr.mxu0 0.0
    %310 = vmatpush1.msra.mxu0 %v298
    %311 = vmatprep.subr.mxu0 0.0
    %312 = vmatpush1.msra.mxu0 %v297
    %313 = vmatprep.subr.mxu0 0.0
    %314 = vmatpush1.msra.mxu0 %v296
    %315 = vmatprep.subr.mxu0 0.0
    %316 = vmatpush1.msra.mxu0 %v295
    %317 = vmatprep.subr.mxu0 0.0
    %318 = vmatpush1.msra.mxu0 %v294
    %319 = vmatprep.subr.mxu0 0.0
    %320 = vmatpush1.msra.mxu0 %v293
    %321 = vmatprep.subr.mxu0 0.0
    %322 = vmatpush1.msra.mxu0 %v292
    %323 = vmatprep.subr.mxu0 0.0
    %324 = vmatpush1.msra.mxu0 %v291
    %325 = vmatprep.subr.mxu0 0.0
    %326 = vmatpush1.msra.mxu0 %v290
    %327 = vmatprep.subr.mxu0 0.0
    %328 = vmatpush1.msra.mxu0 %v289
    %329 = vmatprep.subr.mxu0 0.0
    %330 = vmatpush1.msra.mxu0 %v288
    %331 = vmatprep.subr.mxu0 0.0
    %332 = vmatpush1.msra.mxu0 %v287
    %333 = vmatprep.subr.mxu0 0.0
    %334 = vmatpush1.msra.mxu0 %v286
    %335 = vmatprep.subr.mxu0 0.0
    %336 = vmatpush1.msra.mxu0 %v285
    %337 = vmatprep.subr.mxu0 0.0
    %338 = vmatpush2.msra.mxu0 0.0
    %339 = vmatprep.subr.mxu0 0.0
    %340 = vmatpush2.msra.mxu0 0.0
    %341 = vmatprep.subr.mxu0 0.0
    %342 = vmatpush2.msra.mxu0 0.0
    %343 = vmatprep.subr.mxu0 0.0
    %344 = vmatpush2.msra.mxu0 0.0
    %345 = vmatprep.subr.mxu0 0.0
    %346 = vmatpush2.msra.mxu0 0.0
    %347 = vmatprep.subr.mxu0 0.0
    %348 = vmatpush2.msra.mxu0 0.0
    %349 = vmatprep.subr.mxu0 0.0
    %350 = vmatpush2.msra.mxu0 0.0
    %351 = vmatprep.subr.mxu0 0.0
    %352 = vmatpush2.msra.mxu0 0.0
    %353 = vmatprep.subr.mxu0 0.0
    %354 = vmatpush2.msra.mxu0 0.0
    %355 = vmatprep.subr.mxu0 0.0
    %356 = vmatpush2.msra.mxu0 0.0
    %357 = vmatprep.subr.mxu0 0.0
    %358 = vmatpush2.msra.mxu0 0.0
    %359 = vmatprep.subr.mxu0 0.0
    %360 = vmatpush2.msra.mxu0 0.0
    %361 = vmatprep.subr.mxu0 0.0
    %362 = vmatpush2.msra.mxu0 0.0
    %363 = vmatprep.subr.mxu0 0.0
    %364 = vmatpush2.msra.mxu0 0.0
    %365 = vmatprep.subr.mxu0 0.0
    %366 = vmatpush2.msra.mxu0 0.0
    %367 = vmatprep.subr.mxu0 0.0
    %368 = vmatpush2.msra.mxu0 0.0
    %369 = vmatprep.mubr.f32.mxu0 0.0
    %370 = vmatmul.mubr.f32.gmra.mxu0 %v269
    %v371 = vpop.f32.mrf.mxu0
    %v372 = vadd.f32 %v304, %v371
    %v373 = vpop.f32.mrf.mxu0
    %374 = vmatprep.mubr.f32.mxu0 0.0
    %375 = vmatmul.mubr.f32.gmra.mxu0 %v270
    %v376 = vpop.f32.mrf.mxu0
    %v377 = vadd.f32 %v304, %v376
    %v378 = vpop.f32.mrf.mxu0
    %379 = vmatprep.mubr.f32.mxu0 0.0
    %380 = vmatmul.mubr.f32.gmra.mxu0 %v271
    %v381 = vpop.f32.mrf.mxu0
    %v382 = vadd.f32 %v304, %v381
    %v383 = vpop.f32.mrf.mxu0
    %384 = vmatprep.mubr.f32.mxu0 0.0
    %385 = vmatmul.mubr.f32.gmra.mxu0 %v272
    %v386 = vpop.f32.mrf.mxu0
    %v387 = vadd.f32 %v304, %v386
    %v388 = vpop.f32.mrf.mxu0
    %389 = vmatprep.mubr.f32.mxu0 0.0
    %390 = vmatmul.mubr.f32.gmra.mxu0 %v273
    %v391 = vpop.f32.mrf.mxu0
    %v392 = vadd.f32 %v304, %v391
    %v393 = vpop.f32.mrf.mxu0
    %394 = vmatprep.mubr.f32.mxu0 0.0
    %395 = vmatmul.mubr.f32.gmra.mxu0 %v274
    %v396 = vpop.f32.mrf.mxu0
    %v397 = vadd.f32 %v304, %v396
    %v398 = vpop.f32.mrf.mxu0
    %399 = vmatprep.mubr.f32.mxu0 0.0
    %400 = vmatmul.mubr.f32.gmra.mxu0 %v275
    %v401 = vpop.f32.mrf.mxu0
    %v402 = vadd.f32 %v304, %v401
    %v403 = vpop.f32.mrf.mxu0
    %404 = vmatprep.mubr.f32.mxu0 0.0
    %405 = vmatmul.mubr.f32.gmra.mxu0 %v276
    %v406 = vpop.f32.mrf.mxu0
    %v407 = vadd.f32 %v304, %v406
    %v408 = vpop.f32.mrf.mxu0
    %409 = vmatprep.mubr.f32.mxu0 0.0
    %410 = vmatmul.mubr.f32.gmra.mxu0 %v277
    %v411 = vpop.f32.mrf.mxu0
    %v412 = vadd.f32 %v304, %v411
    %v413 = vpop.f32.mrf.mxu0
    %414 = vmatprep.mubr.f32.mxu0 0.0
    %415 = vmatmul.mubr.f32.gmra.mxu0 %v278
    %v416 = vpop.f32.mrf.mxu0
    %v417 = vadd.f32 %v304, %v416
    %v418 = vpop.f32.mrf.mxu0
    %419 = vmatprep.mubr.f32.mxu0 0.0
    %420 = vmatmul.mubr.f32.gmra.mxu0 %v279
    %v421 = vpop.f32.mrf.mxu0
    %v422 = vadd.f32 %v304, %v421
    %v423 = vpop.f32.mrf.mxu0
    %424 = vmatprep.mubr.f32.mxu0 0.0
    %425 = vmatmul.mubr.f32.gmra.mxu0 %v280
    %v426 = vpop.f32.mrf.mxu0
    %v427 = vadd.f32 %v304, %v426
    %v428 = vpop.f32.mrf.mxu0
    %429 = vmatprep.mubr.f32.mxu0 0.0
    %430 = vmatmul.mubr.f32.gmra.mxu0 %v281
    %v431 = vpop.f32.mrf.mxu0
    %v432 = vadd.f32 %v304, %v431
    %v433 = vpop.f32.mrf.mxu0
    %434 = vmatprep.mubr.f32.mxu0 0.0
    %435 = vmatmul.mubr.f32.gmra.mxu0 %v282
    %v436 = vpop.f32.mrf.mxu0
    %v437 = vadd.f32 %v304, %v436
    %v438 = vpop.f32.mrf.mxu0
    %439 = vmatprep.mubr.f32.mxu0 0.0
    %440 = vmatmul.mubr.f32.gmra.mxu0 %v283
    %v441 = vpop.f32.mrf.mxu0
    %v442 = vadd.f32 %v304, %v441
    %v443 = vpop.f32.mrf.mxu0
    %444 = vmatprep.mubr.f32.mxu0 0.0
    %445 = vmatmul.mubr.f32.gmra.mxu0 %v284
    %v446 = vpop.f32.mrf.mxu0
    %v447 = vadd.f32 %v304, %v446
    %v448 = vpop.f32.mrf.mxu0
    %449 = vdwg.mxu0
    %v450 = vtanh.pop %v372
    %v451 = vtanh.pop %v377
    %v452 = vtanh.pop %v382
    %v453 = vtanh.pop %v387
    %v454 = vtanh.pop %v392
    %v455 = vtanh.pop %v397
    %v456 = vtanh.pop %v402
    %v457 = vtanh.pop %v407
    %v458 = vtanh.pop %v412
    %v459 = vtanh.pop %v417
    %v460 = vtanh.pop %v422
    %v461 = vtanh.pop %v427
    %v462 = vtanh.pop %v432
    %v463 = vtanh.pop %v437
    %v464 = vtanh.pop %v442
    %v465 = vtanh.pop %v447
    %v466 = vld [vmem:[#allocation2] sm:$0xff]
    %v467 = vld [vmem:[#allocation2 + $0x8] sm:$0xff]
    %v468 = vld [vmem:[#allocation2 + $0x10] sm:$0xff]
    %v469 = vld [vmem:[#allocation2 + $0x18] sm:$0xff]
    %v470 = vld [vmem:[#allocation2 + $0x20] sm:$0xff]
    %v471 = vld [vmem:[#allocation2 + $0x28] sm:$0xff]
    %v472 = vld [vmem:[#allocation2 + $0x30] sm:$0xff]
    %v473 = vld [vmem:[#allocation2 + $0x38] sm:$0xff]
    %v474 = vld [vmem:[#allocation2 + $0x40] sm:$0xff]
    %v475 = vld [vmem:[#allocation2 + $0x48] sm:$0xff]
    %v476 = vld [vmem:[#allocation2 + $0x50] sm:$0xff]
    %v477 = vld [vmem:[#allocation2 + $0x58] sm:$0xff]
    %v478 = vld [vmem:[#allocation2 + $0x60] sm:$0xff]
    %v479 = vld [vmem:[#allocation2 + $0x68] sm:$0xff]
    %v480 = vld [vmem:[#allocation2 + $0x70] sm:$0xff]
    %v481 = vld [vmem:[#allocation2 + $0x78] sm:$0xff]
    %v482 = vlaneseq
    %v483 = vshrl.u32 %v482, 7
    %v484 = vsub.s32 2, %v483
    %v485 = vrot.slane %v66, %v484
    %486 = vmatprep.subr.mxu0 0.0
    %487 = vmatpush1.msra.mxu0 %v481
    %488 = vmatprep.subr.mxu0 0.0
    %489 = vmatpush1.msra.mxu0 %v480
    %490 = vmatprep.subr.mxu0 0.0
    %491 = vmatpush1.msra.mxu0 %v479
    %492 = vmatprep.subr.mxu0 0.0
    %493 = vmatpush1.msra.mxu0 %v478
    %494 = vmatprep.subr.mxu0 0.0
    %495 = vmatpush1.msra.mxu0 %v477
    %496 = vmatprep.subr.mxu0 0.0
    %497 = vmatpush1.msra.mxu0 %v476
    %498 = vmatprep.subr.mxu0 0.0
    %499 = vmatpush1.msra.mxu0 %v475
    %500 = vmatprep.subr.mxu0 0.0
    %501 = vmatpush1.msra.mxu0 %v474
    %502 = vmatprep.subr.mxu0 0.0
    %503 = vmatpush1.msra.mxu0 %v473
    %504 = vmatprep.subr.mxu0 0.0
    %505 = vmatpush1.msra.mxu0 %v472
    %506 = vmatprep.subr.mxu0 0.0
    %507 = vmatpush1.msra.mxu0 %v471
    %508 = vmatprep.subr.mxu0 0.0
    %509 = vmatpush1.msra.mxu0 %v470
    %510 = vmatprep.subr.mxu0 0.0
    %511 = vmatpush1.msra.mxu0 %v469
    %512 = vmatprep.subr.mxu0 0.0
    %513 = vmatpush1.msra.mxu0 %v468
    %514 = vmatprep.subr.mxu0 0.0
    %515 = vmatpush1.msra.mxu0 %v467
    %516 = vmatprep.subr.mxu0 0.0
    %517 = vmatpush1.msra.mxu0 %v466
    %518 = vmatprep.subr.mxu0 0.0
    %519 = vmatpush2.msra.mxu0 0.0
    %520 = vmatprep.subr.mxu0 0.0
    %521 = vmatpush2.msra.mxu0 0.0
    %522 = vmatprep.subr.mxu0 0.0
    %523 = vmatpush2.msra.mxu0 0.0
    %524 = vmatprep.subr.mxu0 0.0
    %525 = vmatpush2.msra.mxu0 0.0
    %526 = vmatprep.subr.mxu0 0.0
    %527 = vmatpush2.msra.mxu0 0.0
    %528 = vmatprep.subr.mxu0 0.0
    %529 = vmatpush2.msra.mxu0 0.0
    %530 = vmatprep.subr.mxu0 0.0
    %531 = vmatpush2.msra.mxu0 0.0
    %532 = vmatprep.subr.mxu0 0.0
    %533 = vmatpush2.msra.mxu0 0.0
    %534 = vmatprep.subr.mxu0 0.0
    %535 = vmatpush2.msra.mxu0 0.0
    %536 = vmatprep.subr.mxu0 0.0
    %537 = vmatpush2.msra.mxu0 0.0
    %538 = vmatprep.subr.mxu0 0.0
    %539 = vmatpush2.msra.mxu0 0.0
    %540 = vmatprep.subr.mxu0 0.0
    %541 = vmatpush2.msra.mxu0 0.0
    %542 = vmatprep.subr.mxu0 0.0
    %543 = vmatpush2.msra.mxu0 0.0
    %544 = vmatprep.subr.mxu0 0.0
    %545 = vmatpush2.msra.mxu0 0.0
    %546 = vmatprep.subr.mxu0 0.0
    %547 = vmatpush2.msra.mxu0 0.0
    %548 = vmatprep.subr.mxu0 0.0
    %549 = vmatpush2.msra.mxu0 0.0
    %550 = vmatprep.mubr.f32.mxu0 0.0
    %551 = vmatmul.mubr.f32.gmra.mxu0 %v450
    %v552 = vpop.f32.mrf.mxu0
    %v553 = vadd.f32 %v485, %v552
    %v554 = vpop.f32.mrf.mxu0
    %555 = vmatprep.mubr.f32.mxu0 0.0
    %556 = vmatmul.mubr.f32.gmra.mxu0 %v451
    %v557 = vpop.f32.mrf.mxu0
    %v558 = vadd.f32 %v485, %v557
    %v559 = vpop.f32.mrf.mxu0
    %560 = vmatprep.mubr.f32.mxu0 0.0
    %561 = vmatmul.mubr.f32.gmra.mxu0 %v452
    %v562 = vpop.f32.mrf.mxu0
    %v563 = vadd.f32 %v485, %v562
    %v564 = vpop.f32.mrf.mxu0
    %565 = vmatprep.mubr.f32.mxu0 0.0
    %566 = vmatmul.mubr.f32.gmra.mxu0 %v453
    %v567 = vpop.f32.mrf.mxu0
    %v568 = vadd.f32 %v485, %v567
    %v569 = vpop.f32.mrf.mxu0
    %570 = vmatprep.mubr.f32.mxu0 0.0
    %571 = vmatmul.mubr.f32.gmra.mxu0 %v454
    %v572 = vpop.f32.mrf.mxu0
    %v573 = vadd.f32 %v485, %v572
    %v574 = vpop.f32.mrf.mxu0
    %575 = vmatprep.mubr.f32.mxu0 0.0
    %576 = vmatmul.mubr.f32.gmra.mxu0 %v455
    %v577 = vpop.f32.mrf.mxu0
    %v578 = vadd.f32 %v485, %v577
    %v579 = vpop.f32.mrf.mxu0
    %580 = vmatprep.mubr.f32.mxu0 0.0
    %581 = vmatmul.mubr.f32.gmra.mxu0 %v456
    %v582 = vpop.f32.mrf.mxu0
    %v583 = vadd.f32 %v485, %v582
    %v584 = vpop.f32.mrf.mxu0
    %585 = vmatprep.mubr.f32.mxu0 0.0
    %586 = vmatmul.mubr.f32.gmra.mxu0 %v457
    %v587 = vpop.f32.mrf.mxu0
    %v588 = vadd.f32 %v485, %v587
    %v589 = vpop.f32.mrf.mxu0
    %590 = vmatprep.mubr.f32.mxu0 0.0
    %591 = vmatmul.mubr.f32.gmra.mxu0 %v458
    %v592 = vpop.f32.mrf.mxu0
    %v593 = vadd.f32 %v485, %v592
    %v594 = vpop.f32.mrf.mxu0
    %595 = vmatprep.mubr.f32.mxu0 0.0
    %596 = vmatmul.mubr.f32.gmra.mxu0 %v459
    %v597 = vpop.f32.mrf.mxu0
    %v598 = vadd.f32 %v485, %v597
    %v599 = vpop.f32.mrf.mxu0
    %600 = vmatprep.mubr.f32.mxu0 0.0
    %601 = vmatmul.mubr.f32.gmra.mxu0 %v460
    %v602 = vpop.f32.mrf.mxu0
    %v603 = vadd.f32 %v485, %v602
    %v604 = vpop.f32.mrf.mxu0
    %605 = vmatprep.mubr.f32.mxu0 0.0
    %606 = vmatmul.mubr.f32.gmra.mxu0 %v461
    %v607 = vpop.f32.mrf.mxu0
    %v608 = vadd.f32 %v485, %v607
    %v609 = vpop.f32.mrf.mxu0
    %610 = vmatprep.mubr.f32.mxu0 0.0
    %611 = vmatmul.mubr.f32.gmra.mxu0 %v462
    %v612 = vpop.f32.mrf.mxu0
    %v613 = vadd.f32 %v485, %v612
    %v614 = vpop.f32.mrf.mxu0
    %615 = vmatprep.mubr.f32.mxu0 0.0
    %616 = vmatmul.mubr.f32.gmra.mxu0 %v463
    %v617 = vpop.f32.mrf.mxu0
    %v618 = vadd.f32 %v485, %v617
    %v619 = vpop.f32.mrf.mxu0
    %620 = vmatprep.mubr.f32.mxu0 0.0
    %621 = vmatmul.mubr.f32.gmra.mxu0 %v464
    %v622 = vpop.f32.mrf.mxu0
    %v623 = vadd.f32 %v485, %v622
    %v624 = vpop.f32.mrf.mxu0
    %625 = vmatprep.mubr.f32.mxu0 0.0
    %626 = vmatmul.mubr.f32.gmra.mxu0 %v465
    %v627 = vpop.f32.mrf.mxu0
    %v628 = vadd.f32 %v485, %v627
    %v629 = vpop.f32.mrf.mxu0
    %630 = vdwg.mxu0
    %v631 = vmax.f32 %v553, 0.0
    %v632 = vmax.f32 %v558, 0.0
    %v633 = vmax.f32 %v563, 0.0
    %v634 = vmax.f32 %v568, 0.0
    %v635 = vmax.f32 %v573, 0.0
    %v636 = vmax.f32 %v578, 0.0
    %v637 = vmax.f32 %v583, 0.0
    %v638 = vmax.f32 %v588, 0.0
    %v639 = vmax.f32 %v593, 0.0
    %v640 = vmax.f32 %v598, 0.0
    %v641 = vmax.f32 %v603, 0.0
    %v642 = vmax.f32 %v608, 0.0
    %v643 = vmax.f32 %v613, 0.0
    %v644 = vmax.f32 %v618, 0.0
    %v645 = vmax.f32 %v623, 0.0
    %v646 = vmax.f32 %v628, 0.0
    %v647 = vld [vmem:[#allocation5] sm:$0xff]
    %648 = vmatprep.subr.mxu0 0.0
    %649 = vmatpush1.xpose.msra.mxu0 %v646
    %650 = vmatprep.subr.mxu0 0.0
    %651 = vmatpush1.xpose.msra.mxu0 %v645
    %652 = vmatprep.subr.mxu0 0.0
    %653 = vmatpush1.xpose.msra.mxu0 %v644
    %654 = vmatprep.subr.mxu0 0.0
    %655 = vmatpush1.xpose.msra.mxu0 %v643
    %656 = vmatprep.subr.mxu0 0.0
    %657 = vmatpush1.xpose.msra.mxu0 %v642
    %658 = vmatprep.subr.mxu0 0.0
    %659 = vmatpush1.xpose.msra.mxu0 %v641
    %660 = vmatprep.subr.mxu0 0.0
    %661 = vmatpush1.xpose.msra.mxu0 %v640
    %662 = vmatprep.subr.mxu0 0.0
    %663 = vmatpush1.xpose.msra.mxu0 %v639
    %664 = vmatprep.subr.mxu0 0.0
    %665 = vmatpush1.xpose.msra.mxu0 %v638
    %666 = vmatprep.subr.mxu0 0.0
    %667 = vmatpush1.xpose.msra.mxu0 %v637
    %668 = vmatprep.subr.mxu0 0.0
    %669 = vmatpush1.xpose.msra.mxu0 %v636
    %670 = vmatprep.subr.mxu0 0.0
    %671 = vmatpush1.xpose.msra.mxu0 %v635
    %672 = vmatprep.subr.mxu0 0.0
    %673 = vmatpush1.xpose.msra.mxu0 %v634
    %674 = vmatprep.subr.mxu0 0.0
    %675 = vmatpush1.xpose.msra.mxu0 %v633
    %676 = vmatprep.subr.mxu0 0.0
    %677 = vmatpush1.xpose.msra.mxu0 %v632
    %678 = vmatprep.subr.mxu0 0.0
    %679 = vmatpush1.xpose.msra.mxu0 %v631
    %680 = vmatprep.subr.mxu0 0.0
    %681 = vmatpush2.xpose.msra.mxu0 0.0
    %682 = vmatprep.subr.mxu0 0.0
    %683 = vmatpush2.xpose.msra.mxu0 0.0
    %684 = vmatprep.subr.mxu0 0.0
    %685 = vmatpush2.xpose.msra.mxu0 0.0
    %686 = vmatprep.subr.mxu0 0.0
    %687 = vmatpush2.xpose.msra.mxu0 0.0
    %688 = vmatprep.subr.mxu0 0.0
    %689 = vmatpush2.xpose.msra.mxu0 0.0
    %690 = vmatprep.subr.mxu0 0.0
    %691 = vmatpush2.xpose.msra.mxu0 0.0
    %692 = vmatprep.subr.mxu0 0.0
    %693 = vmatpush2.xpose.msra.mxu0 0.0
    %694 = vmatprep.subr.mxu0 0.0
    %695 = vmatpush2.xpose.msra.mxu0 0.0
    %696 = vmatprep.subr.mxu0 0.0
    %697 = vmatpush2.xpose.msra.mxu0 0.0
    %698 = vmatprep.subr.mxu0 0.0
    %699 = vmatpush2.xpose.msra.mxu0 0.0
    %700 = vmatprep.subr.mxu0 0.0
    %701 = vmatpush2.xpose.msra.mxu0 0.0
    %702 = vmatprep.subr.mxu0 0.0
    %703 = vmatpush2.xpose.msra.mxu0 0.0
    %704 = vmatprep.subr.mxu0 0.0
    %705 = vmatpush2.xpose.msra.mxu0 0.0
    %706 = vmatprep.subr.mxu0 0.0
    %707 = vmatpush2.xpose.msra.mxu0 0.0
    %708 = vmatprep.subr.mxu0 0.0
    %709 = vmatpush2.xpose.msra.mxu0 0.0
    %710 = vmatprep.subr.mxu0 0.0
    %711 = vmatpush2.xpose.msra.mxu0 0.0
    %712 = vmatprep.mubr.f32.mxu0 0.0
    %713 = vmatmul.mubr.f32.gmra.mxu0 %v647
    %v714 = vpop.f32.mrf.mxu0
    %v715 = vadd.f32 0.0, %v714
    %v716 = vpop.f32.mrf.mxu0
    %717 = vdwg.mxu0
    %719 = vset.pattern.permute.xlu0 0
    %720 = vperm.xlu0 %719, %v66
    %v721 = vpop.permute.xlu0 %720
    %v722 = vrot.slane %v721, 3
    %v724 = vadd.f32 %v715, %v722
    %v725 = vxor.u32 %v724, 2147483648
    %v726 = vmul.f32 %v725, 1.442695
    %v727 = vpow.pop %v726
    %v728 = vadd.f32 %v727, 1.0
    %v729 = vrcp.pop %v728
    %v730 = vmul.f32 1.0, %v729
    %731 = vst [vmem:[#allocation7] sm:$0x1] %v730
    // Predicated region
    $region34: #{tpu_custom_call.1} parent=1 // pred_check
      _
    $region35: #{tpu_custom_call.1} parent=1 // pred_check_branch
      %733 = sbr.rel (0) target = $region37
    $region36: #{tpu_custom_call.1} parent=1 // pred_region
      %s735 = ssub.s32 16, 16
      %736 = vsyncadd [#allocation4], %s735
      %s738 = sshll.u32 [#allocation7], 4
      %s739 = int_to_ptr.vmem [resolvable:$true] %s738
      %741 = dma.vmem_to_hbm [thread:$0]  %s739, 16, %s6, [#allocation4]
    $region37: #{tpu_custom_call.1} parent=1 // pred_fallthru
      _
    // Predicated region
    $region38: #{tpu_custom_call.1} parent=1 // pred_check
      _
    $region39: #{tpu_custom_call.1} parent=1 // pred_check_branch
      %743 = sbr.rel (0) target = $region41
    $region40: #{tpu_custom_call.1} parent=1 // pred_region
      %744 = dma.done [#allocation4], 16
    $region41: #{tpu_custom_call.1} parent=1 // pred_fallthru
      _
    %745 = vsyncpa [#allocation3], 1
    %746 = vsyncpa [#allocation6], 1
    %747 = vsyncpa [#allocation4], 1

</llo_original>
